<compile_context>
chip_gen: v7x
topology: tpu7x:2x2x1
jax: 0.10.0
libtpu: 0.0.40
codegen_flags: <defaults>
</compile_context>

<pallas_src>
import math

import jax
import jax.numpy as jnp
from jax.experimental import pallas as pl
from jax.experimental.pallas import tpu as pltpu


_VMEM = pl.BlockSpec(memory_space=pltpu.MemorySpace.VMEM)  # whole-array VMEM ref
_BATCH_BLOCK = 256  # rows per grid step when the batch is large


# ----------------------------------------------------------------------------
# Pallas kernels
# ----------------------------------------------------------------------------
def _apply_inner_act(y, inner_act):
    return jnp.maximum(y, 0.0) if inner_act == "relu" else jax.nn.sigmoid(y)


def _run_mlp(x, wb_refs, inner_act):
    """Chain all Linear layers of one network inside the kernel body."""
    n_layers = len(wb_refs) // 2
    y = x
    for i in range(n_layers):
        w = wb_refs[2 * i][...]
        b = wb_refs[2 * i + 1][...]
        y = jnp.dot(y, w, preferred_element_type=jnp.float32) + b
        if i != n_layers - 1:
            y = _apply_inner_act(y, inner_act)
            # TODO(synk): dropout (identity in eval mode) would be applied here.
    return y


def _make_mlp_kernel(n_layers, inner_act, head):
    """Fused whole-network kernel. head in {'gen', 'disc', 'label'}."""

    def kernel(*refs):
        idx = 0
        x_ref = refs[idx]
        idx += 1
        lab_ref = None
        if head == "disc":
            lab_ref = refs[idx]
            idx += 1
        wb_refs = refs[idx: idx + 2 * n_layers]
        o_ref = refs[idx + 2 * n_layers]

        y = _run_mlp(x_ref[...], wb_refs, inner_act)
        if head == "gen":
            y = jax.nn.sigmoid(y)
        elif head == "disc":
            # sigmoid(y + label*y) == sigmoid(y * (1 + label)): one VALU mul.
            y = jax.nn.sigmoid(y * (1.0 + lab_ref[...]))
        o_ref[...] = y.astype(o_ref.dtype)

    return kernel


def mlp_forward(x, weights, biases, inner_act, head, label=None):
    """Run one network's full MLP as a single pallas_call."""
    B = x.shape[0]
    Dout = weights[-1].shape[1]
    n_layers = len(weights)
    kernel = _make_mlp_kernel(n_layers, inner_act, head)

    wb = []
    for w, b in zip(weights, biases):
        wb.extend([w, b])

    if B <= _BATCH_BLOCK:
        # Small batch: whole-array VMEM refs, no grid, no pipeline machinery.
        args = [x] + ([label] if head == "disc" else []) + wb
        return pl.pallas_call(
            kernel,
            out_shape=jax.ShapeDtypeStruct((B, Dout), jnp.float32),
            in_specs=[_VMEM] * len(args),
            out_specs=_VMEM,
        )(*args)

    # Large batch: tile the batch axis; "parallel" axis feeds both TCs on v7x
    # and lets the BlockSpec pipeline overlap activation DMA with compute.
    TB = _BATCH_BLOCK
    Bp = pl.cdiv(B, TB) * TB
    if Bp != B:
        x = jnp.pad(x, ((0, Bp - B), (0, 0)))
        if label is not None:
            label = jnp.pad(label, ((0, Bp - B), (0, 0)))
    Din = x.shape[1]

    in_specs = [pl.BlockSpec((TB, Din), lambda i: (i, 0))]
    args = [x]
    if head == "disc":
        in_specs.append(pl.BlockSpec((TB, 1), lambda i: (i, 0)))
        args.append(label)
    for w, b in zip(weights, biases):
        in_specs.append(pl.BlockSpec(w.shape, lambda i: (0, 0)))
        in_specs.append(pl.BlockSpec(b.shape, lambda i: (0, 0)))
        args.extend([w, b])

    out = pl.pallas_call(
        kernel,
        out_shape=jax.ShapeDtypeStruct((Bp, Dout), jnp.float32),
        grid=(Bp // TB,),
        in_specs=in_specs,
        out_specs=pl.BlockSpec((TB, Dout), lambda i: (i, 0)),
        compiler_params=pltpu.CompilerParams(dimension_semantics=("parallel",)),
    )(*args)
    return out[:B]


def _make_fused_all_kernel(n_inputs, gen_n, disc_n, label_n,
                           gen_act, disc_act, label_act):
    """One kernel running generator, discriminator and label head from one data load."""
    n_wb = 2 * (gen_n + disc_n + label_n)

    def kernel(data_ref, *refs):
        wb = refs[:n_wb]
        gen_o, disc_o, label_o = refs[n_wb], refs[n_wb + 1], refs[n_wb + 2]

        d = data_ref[...]                      # [B, n_inputs + 1], loaded once
        feats = d[:, :n_inputs]                # [B, n_inputs]
        lab = d[:, n_inputs:n_inputs + 1]      # [B, 1]

        g_wb = wb[: 2 * gen_n]
        d_wb = wb[2 * gen_n: 2 * (gen_n + disc_n)]
        l_wb = wb[2 * (gen_n + disc_n):]

        gen_o[...] = jax.nn.sigmoid(_run_mlp(d, g_wb, gen_act)).astype(gen_o.dtype)
        disc_o[...] = jax.nn.sigmoid(
            _run_mlp(feats, d_wb, disc_act) * (1.0 + lab)).astype(disc_o.dtype)
        label_o[...] = _run_mlp(feats, l_wb, label_act).astype(label_o.dtype)

    return kernel


def rcgan_forward_all(gen, disc, labl, data):
    """Run all three networks in ONE pallas_call (amortizes launch + input DMA)."""
    B = data.shape[0]
    wb = []
    for net in (gen, disc, labl):
        for w, b in zip(net.weights, net.biases):
            wb.extend([w, b])
    kernel = _make_fused_all_kernel(
        gen.n_inputs, len(gen.weights), len(disc.weights), len(labl.weights),
        gen.inner_act, disc.inner_act, labl.inner_act)
    out_shape = (
        jax.ShapeDtypeStruct((B, gen.n_inputs), jnp.float32),
        jax.ShapeDtypeStruct((B, 1), jnp.float32),
        jax.ShapeDtypeStruct((B, labl.n_classes), jnp.float32),
    )
    return pl.pallas_call(
        kernel,
        out_shape=out_shape,
        in_specs=[_VMEM] * (1 + len(wb)),
        out_specs=(_VMEM, _VMEM, _VMEM),
    )(data, *wb)


# ----------------------------------------------------------------------------
# RCGAN module (parameter setup in plain JAX; hot path in Pallas)
# ----------------------------------------------------------------------------
class RCGANPallas:
    def __init__(self, name, n_inputs, n_classes, config,
                 set_gen=False, set_disc=False, set_label=False, key=None):
        self.name = name
        self.n_inputs = n_inputs
        self.n_classes = n_classes
        self.is_gen = set_gen
        self.is_disc = set_disc
        self.is_label = set_label
        gan_config = config["ganconfig"]

        if self.is_gen:
            self.config = gan_config["gen"]
            layer_sizes = [n_inputs + 1] + list(self.config["layer_nodes"]) + [n_inputs]
        elif self.is_disc:
            self.config = gan_config["disc"]
            layer_sizes = [n_inputs] + list(self.config["layer_nodes"]) + [1]
        elif self.is_label:
            self.config = gan_config["label"]
            layer_sizes = [n_inputs, n_classes]
        else:
            raise ValueError("one of set_gen/set_disc/set_label must be True")

        self.inner_act = "relu" if self.config["inneract"] == "relu" else "sigmoid"

        # Deterministic init mirroring torch.nn.Linear default:
        # U(-1/sqrt(fan_in), 1/sqrt(fan_in)) for both weight and bias.
        # (Weights kept f32 so the f32 reference matches exactly; on v6e/v7x one
        # could store bf16 weights with f32 accumulate when scaling up.)
        if key is None:
            key = jax.random.PRNGKey(0)
        self.weights = []
        self.biases = []
        for i in range(len(layer_sizes) - 1):
            fan_in, fan_out = layer_sizes[i], layer_sizes[i + 1]
            bound = 1.0 / math.sqrt(fan_in)
            key, kw, kb = jax.random.split(key, 3)
            w = jax.random.uniform(kw, (fan_in, fan_out), jnp.float32, -bound, bound)
            b = jax.random.uniform(kb, (1, fan_out), jnp.float32, -bound, bound)
            self.weights.append(w)
            self.biases.append(b)

    def __call__(self, data):
        return self.forward(data)

    def forward(self, data):
        squeeze_out = False
        if self.is_gen:
            x = data
            label = None
            head = "gen"
        elif self.is_disc:
            x = data[:, :-1]
            label = data[:, -1].reshape(-1, 1)
            head = "disc"
        else:  # label head
            if data.ndim == 1:
                # Single sample goes through the same batched kernel with B=1.
                x = data[:-1].reshape(1, -1)
                squeeze_out = True
            else:
                x = data[:, :-1]
            label = None
            head = "label"

        out = mlp_forward(x, self.weights, self.biases, self.inner_act, head, label=label)

        if squeeze_out:
            out = out.reshape(-1)
        return out

    # pure-JAX reference for correctness check
    def forward_ref(self, data):
        squeeze_out = False
        if self.is_gen:
            out = data
            label = None
        elif self.is_disc:
            out = data[:, :-1]
            label = data[:, -1].reshape(-1, 1)
        else:
            if data.ndim == 1:
                out = data[:-1].reshape(1, -1)
                squeeze_out = True
            else:
                out = data[:, :-1]
            label = None
        n_layers = len(self.weights)
        for i in range(n_layers):
            out = out @ self.weights[i] + self.biases[i]
            if i != n_layers - 1:
                out = jnp.maximum(out, 0.0) if self.inner_act == "relu" else jax.nn.sigmoid(out)
        if self.is_gen:
            out = jax.nn.sigmoid(out)
        elif self.is_disc:
            out = jax.nn.sigmoid(out + label * out)
        if squeeze_out:
            out = out.reshape(-1)
        return out


# ----------------------------------------------------------------------------
if __name__ == "__main__":
    config = {
        "augconfig": {"augname": "rcgan", "gradmode": "none"},
        "ganconfig": {
            "dropout": 0.0,
            "gen": {"layer_nodes": [32, 16], "inneract": "relu", "learnrate": 1e-3},
            "disc": {"layer_nodes": [32, 16], "inneract": "sigmoid", "learnrate": 1e-3},
            "label": {"inneract": "relu", "learnrate": 1e-3},
        },
    }

    n_inputs = 8
    n_classes = 3
    batch = 8

    key = jax.random.PRNGKey(0)
    k_data, k_lab, k_g, k_d, k_l, k_big, k_biglab = jax.random.split(key, 7)

    # data carries n_inputs features plus one extra (label / conditioning) column
    feats = jax.random.normal(k_data, (batch, n_inputs), jnp.float32)
    labels = jax.random.bernoulli(k_lab, 0.5, (batch, 1)).astype(jnp.float32)
    data = jnp.concatenate([feats, labels], axis=1)  # [batch, n_inputs + 1]

    gen = RCGANPallas("gen", n_inputs, n_classes, config, set_gen=True, key=k_g)
    disc = RCGANPallas("disc", n_inputs, n_classes, config, set_disc=True, key=k_d)
    labl = RCGANPallas("label", n_inputs, n_classes, config, set_label=True, key=k_l)

    # --- per-network fused-MLP kernels (one pallas_call per network) ---
    gen_out = jax.block_until_ready(gen(data))            # [batch, n_inputs]
    disc_out = jax.block_until_ready(disc(data))          # [batch, 1]
    label_out = jax.block_until_ready(labl(data))         # [batch, n_classes]
    label_out_1d = jax.block_until_ready(labl(data[0]))   # [n_classes]

    assert jnp.allclose(gen_out, gen.forward_ref(data), atol=1e-5)
    assert jnp.allclose(disc_out, disc.forward_ref(data), atol=1e-5)
    assert jnp.allclose(label_out, labl.forward_ref(data), atol=1e-5)
    assert jnp.allclose(label_out_1d, labl.forward_ref(data[0]), atol=1e-5)

    assert gen_out.shape == (batch, n_inputs)
    assert disc_out.shape == (batch, 1)
    assert label_out.shape == (batch, n_classes)
    assert label_out_1d.shape == (n_classes,)

    # --- all three networks fused into ONE pallas_call ---
    g_all, d_all, l_all = jax.block_until_ready(rcgan_forward_all(gen, disc, labl, data))
    assert jnp.allclose(g_all, gen_out, atol=1e-5)
    assert jnp.allclose(d_all, disc_out, atol=1e-5)
    assert jnp.allclose(l_all, label_out, atol=1e-5)

    # --- large-batch path: batch-tiled grid marked "parallel" (v7x megacore) ---
    big = 600  # > _BATCH_BLOCK and not a multiple of it (exercises padding)
    feats_b = jax.random.normal(k_big, (big, n_inputs), jnp.float32)
    labels_b = jax.random.bernoulli(k_biglab, 0.5, (big, 1)).astype(jnp.float32)
    data_b = jnp.concatenate([feats_b, labels_b], axis=1)

    gen_big = jax.block_until_ready(gen(data_b))
    disc_big = jax.block_until_ready(disc(data_b))
    label_big = jax.block_until_ready(labl(data_b))
    assert jnp.allclose(gen_big, gen.forward_ref(data_b), atol=1e-5)
    assert jnp.allclose(disc_big, disc.forward_ref(data_b), atol=1e-5)
    assert jnp.allclose(label_big, labl.forward_ref(data_b), atol=1e-5)
    assert gen_big.shape == (big, n_inputs)
    assert disc_big.shape == (big, 1)
    assert label_big.shape == (big, n_classes)

    print("KERNEL_OK")
</pallas_src>

<mosaic_0001>
module attributes {stable_mosaic.version = 11 : i64} {
  func.func @kernel(%arg0: memref<8x9xf32, #tpu.memory_space<vmem>>, %arg1: memref<9x32xf32, #tpu.memory_space<vmem>>, %arg2: memref<1x32xf32, #tpu.memory_space<vmem>>, %arg3: memref<32x16xf32, #tpu.memory_space<vmem>>, %arg4: memref<1x16xf32, #tpu.memory_space<vmem>>, %arg5: memref<16x8xf32, #tpu.memory_space<vmem>>, %arg6: memref<1x8xf32, #tpu.memory_space<vmem>>, %arg7: memref<8x8xf32, #tpu.memory_space<vmem>>) attributes {dimension_semantics = [], scalar_prefetch = 0 : i64, scratch_operands = 0 : i64, tpu.core_type = #tpu.core_type<tc>} {
    %c0 = arith.constant 0 : index
    %c0_0 = arith.constant 0 : index
    %0 = vector.load %arg0[%c0, %c0_0] : memref<8x9xf32, #tpu.memory_space<vmem>>, vector<8x9xf32>
    %c0_1 = arith.constant 0 : index
    %c0_2 = arith.constant 0 : index
    %1 = vector.load %arg1[%c0_1, %c0_2] : memref<9x32xf32, #tpu.memory_space<vmem>>, vector<9x32xf32>
    %c0_3 = arith.constant 0 : index
    %c0_4 = arith.constant 0 : index
    %2 = vector.load %arg2[%c0_3, %c0_4] : memref<1x32xf32, #tpu.memory_space<vmem>>, vector<1x32xf32>
    %cst = arith.constant dense<0.000000e+00> : vector<8x32xf32>
    %3 = tpu.matmul %0, %1, %cst {dimension_numbers = #tpu.dot_dimension_numbers<[1], [0], [0], [1], [0, 0, 1, 1], [], []>} : vector<8x9xf32>, vector<9x32xf32>, vector<8x32xf32> -> vector<8x32xf32>
    %4 = vector.broadcast %2 : vector<1x32xf32> to vector<8x32xf32>
    %5 = arith.addf %3, %4 : vector<8x32xf32>
    %cst_5 = arith.constant 0.000000e+00 : f32
    %6 = vector.broadcast %cst_5 : f32 to vector<8x32xf32>
    %7 = arith.maximumf %5, %6 : vector<8x32xf32>
    %c0_6 = arith.constant 0 : index
    %c0_7 = arith.constant 0 : index
    %8 = vector.load %arg3[%c0_6, %c0_7] : memref<32x16xf32, #tpu.memory_space<vmem>>, vector<32x16xf32>
    %c0_8 = arith.constant 0 : index
    %c0_9 = arith.constant 0 : index
    %9 = vector.load %arg4[%c0_8, %c0_9] : memref<1x16xf32, #tpu.memory_space<vmem>>, vector<1x16xf32>
    %cst_10 = arith.constant dense<0.000000e+00> : vector<8x16xf32>
    %10 = tpu.matmul %7, %8, %cst_10 {dimension_numbers = #tpu.dot_dimension_numbers<[1], [0], [0], [1], [0, 0, 1, 1], [], []>} : vector<8x32xf32>, vector<32x16xf32>, vector<8x16xf32> -> vector<8x16xf32>
    %11 = vector.broadcast %9 : vector<1x16xf32> to vector<8x16xf32>
    %12 = arith.addf %10, %11 : vector<8x16xf32>
    %cst_11 = arith.constant 0.000000e+00 : f32
    %13 = vector.broadcast %cst_11 : f32 to vector<8x16xf32>
    %14 = arith.maximumf %12, %13 : vector<8x16xf32>
    %c0_12 = arith.constant 0 : index
    %c0_13 = arith.constant 0 : index
    %15 = vector.load %arg5[%c0_12, %c0_13] : memref<16x8xf32, #tpu.memory_space<vmem>>, vector<16x8xf32>
    %c0_14 = arith.constant 0 : index
    %c0_15 = arith.constant 0 : index
    %16 = vector.load %arg6[%c0_14, %c0_15] : memref<1x8xf32, #tpu.memory_space<vmem>>, vector<1x8xf32>
    %cst_16 = arith.constant dense<0.000000e+00> : vector<8x8xf32>
    %17 = tpu.matmul %14, %15, %cst_16 {dimension_numbers = #tpu.dot_dimension_numbers<[1], [0], [0], [1], [0, 0, 1, 1], [], []>} : vector<8x16xf32>, vector<16x8xf32>, vector<8x8xf32> -> vector<8x8xf32>
    %18 = vector.broadcast %16 : vector<1x8xf32> to vector<8x8xf32>
    %19 = arith.addf %17, %18 : vector<8x8xf32>
    %20 = arith.negf %19 : vector<8x8xf32>
    %21 = math.exp %20 : vector<8x8xf32>
    %cst_17 = arith.constant 1.000000e+00 : f32
    %22 = vector.broadcast %cst_17 : f32 to vector<8x8xf32>
    %23 = arith.addf %22, %21 : vector<8x8xf32>
    %24 = arith.divf %22, %23 : vector<8x8xf32>
    %c0_18 = arith.constant 0 : index
    %c0_19 = arith.constant 0 : index
    %25 = vector.load %arg7[%c0_18, %c0_19] : memref<8x8xf32, #tpu.memory_space<vmem>>, vector<8x8xf32>
    tpu.vector_store %arg7[%c0_18, %c0_19], %24 {strides = array<i32>} : memref<8x8xf32, #tpu.memory_space<vmem>>, vector<8x8xf32>,
    return
  }
}

</mosaic_0001>

<llo_original>
// kernel: tpu_custom_call.1
$region0: #{tpu_custom_call.1}
  #allocation0 [shape = 'u32[]', space=smem, size = 0x4, offset = 0x4, fixed_abs, tag = 'smem constant byte address 0x4 - core index']
  #allocation1 [shape = 'u32[144,128]{1,0:T(1,128)}', space=vmem, size = 0x12000, scoped, tag = 'internal scratch']
  %s0 = inlined_call_operand.vmem [shape: f32[8,9], index: 0, kind: input, shape index: {}]
  %s1 = inlined_call_operand.vmem [shape: f32[9,32], index: 1, kind: input, shape index: {}]
  %s2 = inlined_call_operand.vmem [shape: f32[1,32], index: 2, kind: input, shape index: {}]
  %s3 = inlined_call_operand.vmem [shape: f32[32,16], index: 3, kind: input, shape index: {}]
  %s4 = inlined_call_operand.vmem [shape: f32[1,16], index: 4, kind: input, shape index: {}]
  %s5 = inlined_call_operand.vmem [shape: f32[16,8], index: 5, kind: input, shape index: {}]
  %s6 = inlined_call_operand.vmem [shape: f32[1,8], index: 6, kind: input, shape index: {}]
  %s7 = inlined_call_operand.hbm [shape: f32[8,8], index: 7, kind: output, shape index: {}]
  %s8 = sld [smem:[#allocation0]]
  $region38: #{tpu_custom_call.1} parent=0
    _
  %s10 = ssub.s32 1, %s8
  %s11 = scalar_select 0, %s10, %s8
  $region1: #{tpu_custom_call.1} parent=0
    #allocation2 [shape = 'u8[4096]{0}', space=vmem, size = 0x1000, scoped, tag = 'output window, operand 0, single buffered']
    #allocation3 [shape = 's32[1]{0}', space=sflag, size = 0x4, scoped, tag = 'scoped memory for tpu_custom_call.1']
    %12 = vsyncpa [#allocation3], 0
    // Predicated region
    $region2: #{tpu_custom_call.1} parent=1 // pred_check
      _
    $region3: #{tpu_custom_call.1} parent=1 // pred_check_branch
      %14 = sbr.rel (0) target = $region5
    $region4: #{tpu_custom_call.1} parent=1 // pred_region
      _
    $region5: #{tpu_custom_call.1} parent=1 // pred_fallthru
      _
    // Predicated region
    $region6: #{tpu_custom_call.1} parent=1 // pred_check
      _
    $region7: #{tpu_custom_call.1} parent=1 // pred_check_branch
      %16 = sbr.rel (0) target = $region9
    $region8: #{tpu_custom_call.1} parent=1 // pred_region
      _
    $region9: #{tpu_custom_call.1} parent=1 // pred_fallthru
      _
    // Predicated region
    $region10: #{tpu_custom_call.1} parent=1 // pred_check
      _
    $region11: #{tpu_custom_call.1} parent=1 // pred_check_branch
      %18 = sbr.rel (0) target = $region13
    $region12: #{tpu_custom_call.1} parent=1 // pred_region
      _
    $region13: #{tpu_custom_call.1} parent=1 // pred_fallthru
      _
    // Predicated region
    $region14: #{tpu_custom_call.1} parent=1 // pred_check
      _
    $region15: #{tpu_custom_call.1} parent=1 // pred_check_branch
      %20 = sbr.rel (0) target = $region17
    $region16: #{tpu_custom_call.1} parent=1 // pred_region
      _
    $region17: #{tpu_custom_call.1} parent=1 // pred_fallthru
      _
    // Predicated region
    $region18: #{tpu_custom_call.1} parent=1 // pred_check
      _
    $region19: #{tpu_custom_call.1} parent=1 // pred_check_branch
      %22 = sbr.rel (0) target = $region21
    $region20: #{tpu_custom_call.1} parent=1 // pred_region
      _
    $region21: #{tpu_custom_call.1} parent=1 // pred_fallthru
      _
    // Predicated region
    $region22: #{tpu_custom_call.1} parent=1 // pred_check
      _
    $region23: #{tpu_custom_call.1} parent=1 // pred_check_branch
      %24 = sbr.rel (0) target = $region25
    $region24: #{tpu_custom_call.1} parent=1 // pred_region
      _
    $region25: #{tpu_custom_call.1} parent=1 // pred_fallthru
      _
    // Predicated region
    $region26: #{tpu_custom_call.1} parent=1 // pred_check
      _
    $region27: #{tpu_custom_call.1} parent=1 // pred_check_branch
      %26 = sbr.rel (0) target = $region29
    $region28: #{tpu_custom_call.1} parent=1 // pred_region
      _
    $region29: #{tpu_custom_call.1} parent=1 // pred_fallthru
      _
    %v27 = vld [vmem:[%s0] sm:$0xff]
    %v28 = vld [vmem:[%s1] sm:$0xff]
    %v29 = vld [vmem:[%s1 + $0x8] sm:$0x1]
    %v30 = vld [vmem:[%s2] sm:$0x1]
    %v32 = vlaneseq
    %v33 = vshrl.u32 %v32, 7
    %v34 = vsub.s32 0, %v33
    %v35 = vrot.slane %v30, %v34
    %vm37 = vcmask 72704
    %v39 = vsel %vm37, %v27, 0
    %vm41 = vcmask 1040384
    %v43 = vsel %vm41, %v29, 0
    %45 = vmatprep.subr.mxu0 0.0
    %46 = vmatpush1.msra.mxu0 %v28
    %47 = vmatprep.subr.mxu0 0.0
    %48 = vmatpush1.msra.mxu0 %v43
    %49 = vmatprep.subr.mxu0 0.0
    %50 = vmatpush1.msra.mxu0 0.0
    %51 = vmatprep.subr.mxu0 0.0
    %52 = vmatpush1.msra.mxu0 0.0
    %53 = vmatprep.subr.mxu0 0.0
    %54 = vmatpush1.msra.mxu0 0.0
    %55 = vmatprep.subr.mxu0 0.0
    %56 = vmatpush1.msra.mxu0 0.0
    %57 = vmatprep.subr.mxu0 0.0
    %58 = vmatpush1.msra.mxu0 0.0
    %59 = vmatprep.subr.mxu0 0.0
    %60 = vmatpush1.msra.mxu0 0.0
    %61 = vmatprep.subr.mxu0 0.0
    %62 = vmatpush1.msra.mxu0 0.0
    %63 = vmatprep.subr.mxu0 0.0
    %64 = vmatpush1.msra.mxu0 0.0
    %65 = vmatprep.subr.mxu0 0.0
    %66 = vmatpush1.msra.mxu0 0.0
    %67 = vmatprep.subr.mxu0 0.0
    %68 = vmatpush1.msra.mxu0 0.0
    %69 = vmatprep.subr.mxu0 0.0
    %70 = vmatpush1.msra.mxu0 0.0
    %71 = vmatprep.subr.mxu0 0.0
    %72 = vmatpush1.msra.mxu0 0.0
    %73 = vmatprep.subr.mxu0 0.0
    %74 = vmatpush1.msra.mxu0 0.0
    %75 = vmatprep.subr.mxu0 0.0
    %76 = vmatpush1.msra.mxu0 0.0
    %77 = vmatprep.subr.mxu0 0.0
    %78 = vmatpush1.msra.mxu0 0.0
    %79 = vmatprep.subr.mxu0 0.0
    %80 = vmatpush1.msra.mxu0 0.0
    %81 = vmatprep.subr.mxu0 0.0
    %82 = vmatpush1.msra.mxu0 0.0
    %83 = vmatprep.subr.mxu0 0.0
    %84 = vmatpush1.msra.mxu0 0.0
    %85 = vmatprep.subr.mxu0 0.0
    %86 = vmatpush1.msra.mxu0 0.0
    %87 = vmatprep.subr.mxu0 0.0
    %88 = vmatpush1.msra.mxu0 0.0
    %89 = vmatprep.subr.mxu0 0.0
    %90 = vmatpush1.msra.mxu0 0.0
    %91 = vmatprep.subr.mxu0 0.0
    %92 = vmatpush1.msra.mxu0 0.0
    %93 = vmatprep.subr.mxu0 0.0
    %94 = vmatpush1.msra.mxu0 0.0
    %95 = vmatprep.subr.mxu0 0.0
    %96 = vmatpush1.msra.mxu0 0.0
    %97 = vmatprep.subr.mxu0 0.0
    %98 = vmatpush1.msra.mxu0 0.0
    %99 = vmatprep.subr.mxu0 0.0
    %100 = vmatpush1.msra.mxu0 0.0
    %101 = vmatprep.subr.mxu0 0.0
    %102 = vmatpush1.msra.mxu0 0.0
    %103 = vmatprep.subr.mxu0 0.0
    %104 = vmatpush1.msra.mxu0 0.0
    %105 = vmatprep.subr.mxu0 0.0
    %106 = vmatpush1.msra.mxu0 0.0
    %107 = vmatprep.subr.mxu0 0.0
    %108 = vmatpush1.msra.mxu0 0.0
    %109 = vmatprep.mubr.f32.mxu0 0.0
    %110 = vmatmul.mubr.f32.gmra.mrb[0].mxu0 %v39
    %v111 = vpop.f32.mrb[0].mxu0
    %v112 = vadd.f32 %v35, %v111
    %v113 = vpop.f32.mrb[0].mxu0
    %114 = vdwg.mxu0
    %v115 = vmax.f32 %v112, 0.0
    %v116 = vld [vmem:[%s3] sm:$0xff]
    %v117 = vld [vmem:[%s3 + $0x8] sm:$0xff]
    %v118 = vld [vmem:[%s3 + $0x10] sm:$0xff]
    %v119 = vld [vmem:[%s3 + $0x18] sm:$0xff]
    %v120 = vld [vmem:[%s4] sm:$0x1]
    %v122 = vlaneseq
    %v123 = vshrl.u32 %v122, 7
    %v124 = vsub.s32 0, %v123
    %v125 = vrot.slane %v120, %v124
    %vm127 = vcmask 261120
    %v129 = vsel %vm127, %v115, 0
    %131 = vmatprep.subr.mxu0 0.0
    %132 = vmatpush1.msra.mxu0 %v116
    %133 = vmatprep.subr.mxu0 0.0
    %134 = vmatpush1.msra.mxu0 %v117
    %135 = vmatprep.subr.mxu0 0.0
    %136 = vmatpush1.msra.mxu0 %v118
    %137 = vmatprep.subr.mxu0 0.0
    %138 = vmatpush1.msra.mxu0 %v119
    %139 = vmatprep.subr.mxu0 0.0
    %140 = vmatpush1.msra.mxu0 0.0
    %141 = vmatprep.subr.mxu0 0.0
    %142 = vmatpush1.msra.mxu0 0.0
    %143 = vmatprep.subr.mxu0 0.0
    %144 = vmatpush1.msra.mxu0 0.0
    %145 = vmatprep.subr.mxu0 0.0
    %146 = vmatpush1.msra.mxu0 0.0
    %147 = vmatprep.subr.mxu0 0.0
    %148 = vmatpush1.msra.mxu0 0.0
    %149 = vmatprep.subr.mxu0 0.0
    %150 = vmatpush1.msra.mxu0 0.0
    %151 = vmatprep.subr.mxu0 0.0
    %152 = vmatpush1.msra.mxu0 0.0
    %153 = vmatprep.subr.mxu0 0.0
    %154 = vmatpush1.msra.mxu0 0.0
    %155 = vmatprep.subr.mxu0 0.0
    %156 = vmatpush1.msra.mxu0 0.0
    %157 = vmatprep.subr.mxu0 0.0
    %158 = vmatpush1.msra.mxu0 0.0
    %159 = vmatprep.subr.mxu0 0.0
    %160 = vmatpush1.msra.mxu0 0.0
    %161 = vmatprep.subr.mxu0 0.0
    %162 = vmatpush1.msra.mxu0 0.0
    %163 = vmatprep.subr.mxu0 0.0
    %164 = vmatpush1.msra.mxu0 0.0
    %165 = vmatprep.subr.mxu0 0.0
    %166 = vmatpush1.msra.mxu0 0.0
    %167 = vmatprep.subr.mxu0 0.0
    %168 = vmatpush1.msra.mxu0 0.0
    %169 = vmatprep.subr.mxu0 0.0
    %170 = vmatpush1.msra.mxu0 0.0
    %171 = vmatprep.subr.mxu0 0.0
    %172 = vmatpush1.msra.mxu0 0.0
    %173 = vmatprep.subr.mxu0 0.0
    %174 = vmatpush1.msra.mxu0 0.0
    %175 = vmatprep.subr.mxu0 0.0
    %176 = vmatpush1.msra.mxu0 0.0
    %177 = vmatprep.subr.mxu0 0.0
    %178 = vmatpush1.msra.mxu0 0.0
    %179 = vmatprep.subr.mxu0 0.0
    %180 = vmatpush1.msra.mxu0 0.0
    %181 = vmatprep.subr.mxu0 0.0
    %182 = vmatpush1.msra.mxu0 0.0
    %183 = vmatprep.subr.mxu0 0.0
    %184 = vmatpush1.msra.mxu0 0.0
    %185 = vmatprep.subr.mxu0 0.0
    %186 = vmatpush1.msra.mxu0 0.0
    %187 = vmatprep.subr.mxu0 0.0
    %188 = vmatpush1.msra.mxu0 0.0
    %189 = vmatprep.subr.mxu0 0.0
    %190 = vmatpush1.msra.mxu0 0.0
    %191 = vmatprep.subr.mxu0 0.0
    %192 = vmatpush1.msra.mxu0 0.0
    %193 = vmatprep.subr.mxu0 0.0
    %194 = vmatpush1.msra.mxu0 0.0
    %195 = vmatprep.mubr.f32.mxu0 0.0
    %196 = vmatmul.mubr.f32.gmra.mrb[0].mxu0 %v129
    %v197 = vpop.f32.mrb[0].mxu0
    %v198 = vadd.f32 %v125, %v197
    %v199 = vpop.f32.mrb[0].mxu0
    %200 = vdwg.mxu0
    %v201 = vmax.f32 %v198, 0.0
    %v202 = vld [vmem:[%s5] sm:$0xff]
    %v203 = vld [vmem:[%s5 + $0x8] sm:$0xff]
    %v204 = vld [vmem:[%s6] sm:$0x1]
    %v206 = vlaneseq
    %v207 = vshrl.u32 %v206, 7
    %v208 = vsub.s32 0, %v207
    %v209 = vrot.slane %v204, %v208
    %vm211 = vcmask 130048
    %v213 = vsel %vm211, %v201, 0
    %215 = vmatprep.subr.mxu0 0.0
    %216 = vmatpush1.msra.mxu0 %v202
    %217 = vmatprep.subr.mxu0 0.0
    %218 = vmatpush1.msra.mxu0 %v203
    %219 = vmatprep.subr.mxu0 0.0
    %220 = vmatpush1.msra.mxu0 0.0
    %221 = vmatprep.subr.mxu0 0.0
    %222 = vmatpush1.msra.mxu0 0.0
    %223 = vmatprep.subr.mxu0 0.0
    %224 = vmatpush1.msra.mxu0 0.0
    %225 = vmatprep.subr.mxu0 0.0
    %226 = vmatpush1.msra.mxu0 0.0
    %227 = vmatprep.subr.mxu0 0.0
    %228 = vmatpush1.msra.mxu0 0.0
    %229 = vmatprep.subr.mxu0 0.0
    %230 = vmatpush1.msra.mxu0 0.0
    %231 = vmatprep.subr.mxu0 0.0
    %232 = vmatpush1.msra.mxu0 0.0
    %233 = vmatprep.subr.mxu0 0.0
    %234 = vmatpush1.msra.mxu0 0.0
    %235 = vmatprep.subr.mxu0 0.0
    %236 = vmatpush1.msra.mxu0 0.0
    %237 = vmatprep.subr.mxu0 0.0
    %238 = vmatpush1.msra.mxu0 0.0
    %239 = vmatprep.subr.mxu0 0.0
    %240 = vmatpush1.msra.mxu0 0.0
    %241 = vmatprep.subr.mxu0 0.0
    %242 = vmatpush1.msra.mxu0 0.0
    %243 = vmatprep.subr.mxu0 0.0
    %244 = vmatpush1.msra.mxu0 0.0
    %245 = vmatprep.subr.mxu0 0.0
    %246 = vmatpush1.msra.mxu0 0.0
    %247 = vmatprep.subr.mxu0 0.0
    %248 = vmatpush1.msra.mxu0 0.0
    %249 = vmatprep.subr.mxu0 0.0
    %250 = vmatpush1.msra.mxu0 0.0
    %251 = vmatprep.subr.mxu0 0.0
    %252 = vmatpush1.msra.mxu0 0.0
    %253 = vmatprep.subr.mxu0 0.0
    %254 = vmatpush1.msra.mxu0 0.0
    %255 = vmatprep.subr.mxu0 0.0
    %256 = vmatpush1.msra.mxu0 0.0
    %257 = vmatprep.subr.mxu0 0.0
    %258 = vmatpush1.msra.mxu0 0.0
    %259 = vmatprep.subr.mxu0 0.0
    %260 = vmatpush1.msra.mxu0 0.0
    %261 = vmatprep.subr.mxu0 0.0
    %262 = vmatpush1.msra.mxu0 0.0
    %263 = vmatprep.subr.mxu0 0.0
    %264 = vmatpush1.msra.mxu0 0.0
    %265 = vmatprep.subr.mxu0 0.0
    %266 = vmatpush1.msra.mxu0 0.0
    %267 = vmatprep.subr.mxu0 0.0
    %268 = vmatpush1.msra.mxu0 0.0
    %269 = vmatprep.subr.mxu0 0.0
    %270 = vmatpush1.msra.mxu0 0.0
    %271 = vmatprep.subr.mxu0 0.0
    %272 = vmatpush1.msra.mxu0 0.0
    %273 = vmatprep.subr.mxu0 0.0
    %274 = vmatpush1.msra.mxu0 0.0
    %275 = vmatprep.subr.mxu0 0.0
    %276 = vmatpush1.msra.mxu0 0.0
    %277 = vmatprep.subr.mxu0 0.0
    %278 = vmatpush1.msra.mxu0 0.0
    %279 = vmatprep.mubr.f32.mxu0 0.0
    %280 = vmatmul.mubr.f32.gmra.mrb[0].mxu0 %v213
    %v281 = vpop.f32.mrb[0].mxu0
    %v282 = vadd.f32 %v209, %v281
    %v283 = vpop.f32.mrb[0].mxu0
    %284 = vdwg.mxu0
    %v285 = vxor.u32 %v282, 2147483648
    %v286 = vmul.f32 %v285, 1.442695
    %v287 = vpow.pop %v286
    %v288 = vadd.f32 %v287, 1.0
    %v289 = vrcp.pop %v288
    %v290 = vmul.f32 1.0, %v289
    %vm291 = vcmask 64512
    %292 = vst.msk [vmem:[#allocation2] sm:$0xff] %vm291, %v290
    // Predicated region
    $region30: #{tpu_custom_call.1} parent=1 // pred_check
      _
    $region31: #{tpu_custom_call.1} parent=1 // pred_check_branch
      %294 = sbr.rel (0) target = $region33
    $region32: #{tpu_custom_call.1} parent=1 // pred_region
      %s296 = ssub.s32 128, 128
      %297 = vsyncadd [#allocation3], %s296
      %s299 = sshll.u32 [#allocation2], 4
      %s300 = int_to_ptr.vmem [resolvable:$true] %s299
      %302 = dma.vmem_to_hbm [thread:$0]  %s300, 128, %s7, [#allocation3]
    $region33: #{tpu_custom_call.1} parent=1 // pred_fallthru
      _
    // Predicated region
    $region34: #{tpu_custom_call.1} parent=1 // pred_check
      _
    $region35: #{tpu_custom_call.1} parent=1 // pred_check_branch
      %304 = sbr.rel (0) target = $region37
    $region36: #{tpu_custom_call.1} parent=1 // pred_region
      %305 = dma.done [#allocation3], 128
    $region37: #{tpu_custom_call.1} parent=1 // pred_fallthru
      _
    %306 = vsyncpa [#allocation3], 1

</llo_original>
